<compile_context>
chip_gen: v5e
topology: v5e:2x2
jax: 0.10.0
libtpu: 0.0.40
codegen_flags: <defaults>
</compile_context>

<pallas_src>
import functools

import jax
import jax.numpy as jnp
from jax.experimental import pallas as pl
from jax.experimental.pallas import tpu as pltpu


# ----------------------------------------------------------------------------
# Fused Classifier kernel:  logits = ((x@W1) * gate-free bilinear) @ W2
#   h1 = x @ W1 ; hb = (h1 @ Wb) * (h1 @ Vb) ; logits = hb @ W2
# All weights are bf16 and fully VMEM-resident per grid step; activations are
# cast to bf16 in-kernel; all dots accumulate in f32 on the MXU.
# ----------------------------------------------------------------------------
def _classifier_kernel(x_ref, w1_ref, wb_ref, wv_ref, w2_ref, o_ref):
    x = x_ref[...].astype(jnp.bfloat16)
    h1 = jnp.dot(x, w1_ref[...], preferred_element_type=jnp.float32)
    h1b = h1.astype(jnp.bfloat16)
    p = jnp.dot(h1b, wb_ref[...], preferred_element_type=jnp.float32)
    q = jnp.dot(h1b, wv_ref[...], preferred_element_type=jnp.float32)
    hb = (p * q).astype(jnp.bfloat16)
    o_ref[...] = jnp.dot(hb, w2_ref[...],
                         preferred_element_type=jnp.float32).astype(o_ref.dtype)


def classifier_forward(params, x, *, max_block_m=512):
    """x: (M, D) float32 -> logits (M, C) float32."""
    M, D = x.shape
    C = params["w2"].shape[1]

    # Pad rows to the 8-row sublane granularity.
    Mp = ((M + 7) // 8) * 8
    xp = x if Mp == M else jnp.pad(x, ((0, Mp - M), (0, 0)))

    # Row tile: split into (at least) 2 "parallel" blocks when possible so v7x's
    # two TensorCores both get work; cap the tile so big batches still pipeline.
    if Mp >= 16:
        bm = min(Mp // 2, max_block_m)
        while Mp % bm != 0:          # keep an exact grid (bm stays a multiple of 8)
            bm -= 8
    else:
        bm = Mp
    grid = (Mp // bm,)

    out = pl.pallas_call(
        _classifier_kernel,
        out_shape=jax.ShapeDtypeStruct((Mp, C), jnp.float32),
        grid=grid,
        in_specs=[
            pl.BlockSpec((bm, D), lambda i: (i, 0)),   # x rows
            pl.BlockSpec((D, D), lambda i: (0, 0)),    # W1
            pl.BlockSpec((D, D), lambda i: (0, 0)),    # Wb
            pl.BlockSpec((D, D), lambda i: (0, 0)),    # Vb
            pl.BlockSpec((D, C), lambda i: (0, 0)),    # W2
        ],
        out_specs=pl.BlockSpec((bm, C), lambda i: (i, 0)),
        compiler_params=pltpu.CompilerParams(
            dimension_semantics=("parallel",)),
    )(xp, params["w1"], params["wb"], params["wv"], params["w2"])

    return out[:M] if Mp != M else out


# ----------------------------------------------------------------------------
# Parameters: PyTorch nn.Linear layout (out, in), then pre-arranged ONCE into
# kernel-ready (in, out) bf16 form.  f32 copies are kept only for the reference.
# ----------------------------------------------------------------------------
def init_params(key, hidden_dim=128, num_classes=10):
    ks = jax.random.split(key, 4)

    def u(k, shape, fan_in):
        bound = 1.0 / (fan_in ** 0.5)
        return jax.random.uniform(k, shape, jnp.float32, -bound, bound)

    fc1_w = u(ks[0], (hidden_dim, hidden_dim), hidden_dim)       # (out, in)
    bil_w = u(ks[1], (hidden_dim, hidden_dim), hidden_dim)
    bil_v = u(ks[2], (hidden_dim, hidden_dim), hidden_dim)
    fc2_w = u(ks[3], (num_classes, hidden_dim), hidden_dim)

    kernel_params = dict(
        w1=fc1_w.T.astype(jnp.bfloat16),                         # (D, D)
        wb=bil_w.T.astype(jnp.bfloat16),
        wv=bil_v.T.astype(jnp.bfloat16),
        w2=fc2_w.T.astype(jnp.bfloat16),                         # (D, C)
    )
    ref_params = dict(w1=fc1_w.T, wb=bil_w.T, wv=bil_v.T, w2=fc2_w.T)
    return kernel_params, ref_params


def classifier_ref(ref_params, x):
    """Pure-JAX f32 reference of the same forward."""
    h1 = x @ ref_params["w1"]
    hb = (h1 @ ref_params["wb"]) * (h1 @ ref_params["wv"])
    return hb @ ref_params["w2"]


if __name__ == "__main__":
    key = jax.random.PRNGKey(0)
    pkey, xkey = jax.random.split(key)

    HIDDEN, CLASSES, BATCH = 128, 10, 16
    params, ref_params = init_params(pkey, HIDDEN, CLASSES)
    x = jax.random.normal(xkey, (BATCH, HIDDEN), jnp.float32)

    fwd = jax.jit(functools.partial(classifier_forward, params))
    logits = fwd(x)
    jax.block_until_ready(logits)

    assert logits.shape == (BATCH, CLASSES)

    # Correctness check against the pure-JAX f32 reference (bf16-MXU tolerance).
    ref = classifier_ref(ref_params, x)
    max_err = float(jnp.max(jnp.abs(logits - ref)))
    assert max_err < 5e-2, f"max abs error too large: {max_err}"

    print("KERNEL_OK")
</pallas_src>

<mosaic_0001>
module attributes {stable_mosaic.version = 11 : i64} {
  func.func @_classifier_kernel(%arg0: i32, %arg1: memref<8x128xf32, #tpu.memory_space<vmem>>, %arg2: memref<128x128xbf16, #tpu.memory_space<vmem>>, %arg3: memref<128x128xbf16, #tpu.memory_space<vmem>>, %arg4: memref<128x128xbf16, #tpu.memory_space<vmem>>, %arg5: memref<128x10xbf16, #tpu.memory_space<vmem>>, %arg6: memref<8x10xf32, #tpu.memory_space<vmem>>) attributes {dimension_semantics = [#tpu.dimension_semantics<parallel>], iteration_bounds = array<i64: 2>, scalar_prefetch = 0 : i64, scratch_operands = 0 : i64, tpu.core_type = #tpu.core_type<tc>, window_params = [{transform_indices = @transform_0, window_bounds = array<i64: 8, 128>}, {pipeline_mode = #tpu.pipeline_mode<synchronous>, transform_indices = @transform_1, window_bounds = array<i64: 128, 128>}, {pipeline_mode = #tpu.pipeline_mode<synchronous>, transform_indices = @transform_2, window_bounds = array<i64: 128, 128>}, {pipeline_mode = #tpu.pipeline_mode<synchronous>, transform_indices = @transform_3, window_bounds = array<i64: 128, 128>}, {pipeline_mode = #tpu.pipeline_mode<synchronous>, transform_indices = @transform_4, window_bounds = array<i64: 128, 10>}, {transform_indices = @transform_5, window_bounds = array<i64: 8, 10>}]} {
    %c0 = arith.constant 0 : index
    %c0_0 = arith.constant 0 : index
    %0 = vector.load %arg1[%c0, %c0_0] : memref<8x128xf32, #tpu.memory_space<vmem>>, vector<8x128xf32>
    %1 = arith.truncf %0 : vector<8x128xf32> to vector<8x128xbf16>
    %c0_1 = arith.constant 0 : index
    %c0_2 = arith.constant 0 : index
    %2 = vector.load %arg2[%c0_1, %c0_2] : memref<128x128xbf16, #tpu.memory_space<vmem>>, vector<128x128xbf16>
    %cst = arith.constant dense<0.000000e+00> : vector<8x128xf32>
    %3 = tpu.matmul %1, %2, %cst {dimension_numbers = #tpu.dot_dimension_numbers<[1], [0], [0], [1], [0, 0, 1, 1], [], []>} : vector<8x128xbf16>, vector<128x128xbf16>, vector<8x128xf32> -> vector<8x128xf32>
    %4 = arith.truncf %3 : vector<8x128xf32> to vector<8x128xbf16>
    %c0_3 = arith.constant 0 : index
    %c0_4 = arith.constant 0 : index
    %5 = vector.load %arg3[%c0_3, %c0_4] : memref<128x128xbf16, #tpu.memory_space<vmem>>, vector<128x128xbf16>
    %cst_5 = arith.constant dense<0.000000e+00> : vector<8x128xf32>
    %6 = tpu.matmul %4, %5, %cst_5 {dimension_numbers = #tpu.dot_dimension_numbers<[1], [0], [0], [1], [0, 0, 1, 1], [], []>} : vector<8x128xbf16>, vector<128x128xbf16>, vector<8x128xf32> -> vector<8x128xf32>
    %c0_6 = arith.constant 0 : index
    %c0_7 = arith.constant 0 : index
    %7 = vector.load %arg4[%c0_6, %c0_7] : memref<128x128xbf16, #tpu.memory_space<vmem>>, vector<128x128xbf16>
    %cst_8 = arith.constant dense<0.000000e+00> : vector<8x128xf32>
    %8 = tpu.matmul %4, %7, %cst_8 {dimension_numbers = #tpu.dot_dimension_numbers<[1], [0], [0], [1], [0, 0, 1, 1], [], []>} : vector<8x128xbf16>, vector<128x128xbf16>, vector<8x128xf32> -> vector<8x128xf32>
    %9 = arith.mulf %6, %8 : vector<8x128xf32>
    %10 = arith.truncf %9 : vector<8x128xf32> to vector<8x128xbf16>
    %c0_9 = arith.constant 0 : index
    %c0_10 = arith.constant 0 : index
    %11 = vector.load %arg5[%c0_9, %c0_10] : memref<128x10xbf16, #tpu.memory_space<vmem>>, vector<128x10xbf16>
    %cst_11 = arith.constant dense<0.000000e+00> : vector<8x10xf32>
    %12 = tpu.matmul %10, %11, %cst_11 {dimension_numbers = #tpu.dot_dimension_numbers<[1], [0], [0], [1], [0, 0, 1, 1], [], []>} : vector<8x128xbf16>, vector<128x10xbf16>, vector<8x10xf32> -> vector<8x10xf32>
    %c0_12 = arith.constant 0 : index
    %c0_13 = arith.constant 0 : index
    %13 = vector.load %arg6[%c0_12, %c0_13] : memref<8x10xf32, #tpu.memory_space<vmem>>, vector<8x10xf32>
    tpu.vector_store %arg6[%c0_12, %c0_13], %12 {strides = array<i32>} : memref<8x10xf32, #tpu.memory_space<vmem>>, vector<8x10xf32>,
    return
  }
  func.func @transform_0(%arg0: i32) -> (i32, i32) {
    %c0_i32 = arith.constant 0 : i32
    %c0_i32_0 = arith.constant 0 : i32
    return %arg0, %c0_i32 : i32, i32
  }
  func.func @transform_1(%arg0: i32) -> (i32, i32) {
    %c0_i32 = arith.constant 0 : i32
    %c0_i32_0 = arith.constant 0 : i32
    %c0_i32_1 = arith.constant 0 : i32
    return %c0_i32, %c0_i32_0 : i32, i32
  }
  func.func @transform_2(%arg0: i32) -> (i32, i32) {
    %c0_i32 = arith.constant 0 : i32
    %c0_i32_0 = arith.constant 0 : i32
    %c0_i32_1 = arith.constant 0 : i32
    return %c0_i32, %c0_i32_0 : i32, i32
  }
  func.func @transform_3(%arg0: i32) -> (i32, i32) {
    %c0_i32 = arith.constant 0 : i32
    %c0_i32_0 = arith.constant 0 : i32
    %c0_i32_1 = arith.constant 0 : i32
    return %c0_i32, %c0_i32_0 : i32, i32
  }
  func.func @transform_4(%arg0: i32) -> (i32, i32) {
    %c0_i32 = arith.constant 0 : i32
    %c0_i32_0 = arith.constant 0 : i32
    %c0_i32_1 = arith.constant 0 : i32
    return %c0_i32, %c0_i32_0 : i32, i32
  }
  func.func @transform_5(%arg0: i32) -> (i32, i32) {
    %c0_i32 = arith.constant 0 : i32
    %c0_i32_0 = arith.constant 0 : i32
    return %arg0, %c0_i32 : i32, i32
  }
}

</mosaic_0001>

<llo_original>
// kernel: classifier_forward.1
$region0: #{classifier_forward.1}
  #allocation0 [shape = 'u32[]', space=smem, size = 0x4, offset = 0x4, fixed_abs, tag = 'smem constant byte address 0x4 - core index']
  #allocation1 [shape = 'u32[72,128]{1,0:T(1,128)}', space=vmem, size = 0x9000, scoped, tag = 'internal scratch']
  %s0 = inlined_call_operand.hbm [shape: f32[16,128], index: 0, kind: input, shape index: {}]
  %s1 = inlined_call_operand.hbm [shape: bf16[128,128], index: 1, kind: input, shape index: {}]
  %s2 = inlined_call_operand.hbm [shape: bf16[128,128], index: 2, kind: input, shape index: {}]
  %s3 = inlined_call_operand.hbm [shape: bf16[128,128], index: 3, kind: input, shape index: {}]
  %s4 = inlined_call_operand.hbm [shape: bf16[128,10], index: 4, kind: input, shape index: {}]
  %s5 = inlined_call_operand.hbm [shape: f32[16,10], index: 5, kind: output, shape index: {}]
  %s6 = sld [smem:[#allocation0]]
  $region73: #{classifier_forward.1} parent=0
    _
  %s8 = ssub.s32 1, %s6
  %s9 = scalar_select 0, %s8, %s6
  $region1: #{classifier_forward.1} parent=0
    #allocation2 [shape = 'u8[8192]{0}', space=vmem, size = 0x2000, scoped, tag = 'input window, operand 0']
    #allocation3 [shape = 's32[2]{0}', space=sflag, size = 0x8, scoped, tag = 'scoped memory for classifier_forward.1']
    #allocation4 [shape = 's32[2]{0}', space=sflag, size = 0x8, scoped, tag = 'scoped memory for classifier_forward.1']
    #allocation5 [shape = 'u8[32768]{0}', space=vmem, size = 0x8000, scoped, tag = 'input window, operand 1, single buffered']
    #allocation6 [shape = 's32[1]{0}', space=sflag, size = 0x4, scoped, tag = 'scoped memory for classifier_forward.1']
    #allocation7 [shape = 'u8[32768]{0}', space=vmem, size = 0x8000, scoped, tag = 'input window, operand 2, single buffered']
    #allocation8 [shape = 'u8[32768]{0}', space=vmem, size = 0x8000, scoped, tag = 'input window, operand 3, single buffered']
    #allocation9 [shape = 's32[1]{0}', space=sflag, size = 0x4, scoped, tag = 'scoped memory for classifier_forward.1']
    #allocation10 [shape = 'u8[32768]{0}', space=vmem, size = 0x8000, scoped, tag = 'input window, operand 4, single buffered']
    #allocation11 [shape = 'u8[8192]{0}', space=vmem, size = 0x2000, scoped, tag = 'output window, operand 0']
    %10 = vsyncpa [#allocation3], 0
    %s11 = scalar_lea.sflag [#allocation3], 1
    %12 = vsyncpa %s11, 0
    %13 = vsyncpa [#allocation6], 0
    %14 = vsyncpa [#allocation9], 0
    %15 = vsyncpa [#allocation4], 0
    %s16 = scalar_lea.sflag [#allocation4], 1
    %17 = vsyncpa %s16, 0
    loop: start=0, step=1, limit=4
    $region2: #{classifier_forward.1} parent=1 // loop_pre_header
      _
    $region3: #{classifier_forward.1} parent=1 // loop_header
      %s19 = sphi 0, %s23
      %p20 = scmp.ge.s32.totalorder %s19, 4
      %s29 = sphi 0, %s31
      %s32 = sphi 0, %s29
      %s33 = sphi 0, %s32
      %s49 = sphi 0, %s33
      %s53 = sphi 0, %s53
      %s55 = sphi 0, %s53
      %s56 = sphi 0, %s55
      %s70 = sphi 0, %s56
      %s74 = sphi 0, %s74
      %s76 = sphi 0, %s74
      %s77 = sphi 0, %s76
      %s91 = sphi 0, %s77
      %s95 = sphi 0, %s95
      %s97 = sphi 0, %s95
      %s98 = sphi 0, %s97
      %s112 = sphi 0, %s98
      %s116 = sphi 0, %s116
      %s118 = sphi 0, %s116
      %s119 = sphi 0, %s118
      %s133 = sphi 0, %s119
      %s139 = sphi 0, %s141
      %s142 = sphi 0, %s139
      %s143 = sphi 0, %s142
      %s159 = sphi 0, %s143
    $region4: #{classifier_forward.1} parent=1 // loop_header_branch
      %22 = sbr.rel (%p20) target = $region8
    $region5: #{classifier_forward.1} parent=1 // loop_body
      %s24 = ssub.s32 %s19, 1
      %s25 = ssub.s32 %s19, 2
      %s26 = sadd.s32 %s19, 1
      %s27 = ssub.s32 %s19, %s26
      %p28 = scmp.eq.s32.totalorder %s27, 0
      %s30 = sadd.s32 %s29, 1
      %s31 = scalar_select %p28, %s29, %s30
      %p34 = pneg %p28
      %p35 = scmp.eq.s32.totalorder %s19, 1
      %p36 = por %p34, %p35
      %p37 = scmp.ne.s32.totalorder %s29, %s32
      %p38 = scmp.eq.s32.totalorder %s19, 0
      %p39 = por %p37, %p38
      %p40 = scmp.ne.s32.totalorder %s29, %s32
      %p41 = scmp.eq.s32.totalorder %s24, 1
      %p42 = por %p40, %p41
      %p43 = scmp.ne.s32.totalorder %s32, %s33
      %p44 = scmp.eq.s32.totalorder %s24, 0
      %p45 = por %p43, %p44
      %p46 = scmp.ne.s32.totalorder %s32, %s33
      %p47 = scmp.eq.s32.totalorder %s25, 1
      %p48 = por %p46, %p47
      %p50 = scmp.ne.s32.totalorder %s33, %s49
      %p51 = scmp.eq.s32.totalorder %s25, 0
      %p52 = por %p50, %p51
      %s54 = sadd.s32 %s53, 1
      %p57 = scmp.eq.s32.totalorder %s19, 1
      %p58 = scmp.ne.s32.totalorder %s53, %s55
      %p59 = scmp.eq.s32.totalorder %s19, 0
      %p60 = por %p58, %p59
      %p61 = scmp.ne.s32.totalorder %s53, %s55
      %p62 = scmp.eq.s32.totalorder %s24, 1
      %p63 = por %p61, %p62
      %p64 = scmp.ne.s32.totalorder %s55, %s56
      %p65 = scmp.eq.s32.totalorder %s24, 0
      %p66 = por %p64, %p65
      %p67 = scmp.ne.s32.totalorder %s55, %s56
      %p68 = scmp.eq.s32.totalorder %s25, 1
      %p69 = por %p67, %p68
      %p71 = scmp.ne.s32.totalorder %s56, %s70
      %p72 = scmp.eq.s32.totalorder %s25, 0
      %p73 = por %p71, %p72
      %s75 = sadd.s32 %s74, 1
      %p78 = scmp.eq.s32.totalorder %s19, 1
      %p79 = scmp.ne.s32.totalorder %s74, %s76
      %p80 = scmp.eq.s32.totalorder %s19, 0
      %p81 = por %p79, %p80
      %p82 = scmp.ne.s32.totalorder %s74, %s76
      %p83 = scmp.eq.s32.totalorder %s24, 1
      %p84 = por %p82, %p83
      %p85 = scmp.ne.s32.totalorder %s76, %s77
      %p86 = scmp.eq.s32.totalorder %s24, 0
      %p87 = por %p85, %p86
      %p88 = scmp.ne.s32.totalorder %s76, %s77
      %p89 = scmp.eq.s32.totalorder %s25, 1
      %p90 = por %p88, %p89
      %p92 = scmp.ne.s32.totalorder %s77, %s91
      %p93 = scmp.eq.s32.totalorder %s25, 0
      %p94 = por %p92, %p93
      %s96 = sadd.s32 %s95, 1
      %p99 = scmp.eq.s32.totalorder %s19, 1
      %p100 = scmp.ne.s32.totalorder %s95, %s97
      %p101 = scmp.eq.s32.totalorder %s19, 0
      %p102 = por %p100, %p101
      %p103 = scmp.ne.s32.totalorder %s95, %s97
      %p104 = scmp.eq.s32.totalorder %s24, 1
      %p105 = por %p103, %p104
      %p106 = scmp.ne.s32.totalorder %s97, %s98
      %p107 = scmp.eq.s32.totalorder %s24, 0
      %p108 = por %p106, %p107
      %p109 = scmp.ne.s32.totalorder %s97, %s98
      %p110 = scmp.eq.s32.totalorder %s25, 1
      %p111 = por %p109, %p110
      %p113 = scmp.ne.s32.totalorder %s98, %s112
      %p114 = scmp.eq.s32.totalorder %s25, 0
      %p115 = por %p113, %p114
      %s117 = sadd.s32 %s116, 1
      %p120 = scmp.eq.s32.totalorder %s19, 1
      %p121 = scmp.ne.s32.totalorder %s116, %s118
      %p122 = scmp.eq.s32.totalorder %s19, 0
      %p123 = por %p121, %p122
      %p124 = scmp.ne.s32.totalorder %s116, %s118
      %p125 = scmp.eq.s32.totalorder %s24, 1
      %p126 = por %p124, %p125
      %p127 = scmp.ne.s32.totalorder %s118, %s119
      %p128 = scmp.eq.s32.totalorder %s24, 0
      %p129 = por %p127, %p128
      %p130 = scmp.ne.s32.totalorder %s118, %s119
      %p131 = scmp.eq.s32.totalorder %s25, 1
      %p132 = por %p130, %p131
      %p134 = scmp.ne.s32.totalorder %s119, %s133
      %p135 = scmp.eq.s32.totalorder %s25, 0
      %p136 = por %p134, %p135
      %s137 = ssub.s32 %s19, %s26
      %p138 = scmp.eq.s32.totalorder %s137, 0
      %s140 = sadd.s32 %s139, 1
      %s141 = scalar_select %p138, %s139, %s140
      %p144 = pneg %p138
      %p145 = scmp.eq.s32.totalorder %s19, 1
      %p146 = por %p144, %p145
      %p147 = scmp.ne.s32.totalorder %s139, %s142
      %p148 = scmp.eq.s32.totalorder %s19, 0
      %p149 = por %p147, %p148
      %p150 = scmp.ne.s32.totalorder %s139, %s142
      %p151 = scmp.eq.s32.totalorder %s24, 1
      %p152 = por %p150, %p151
      %p153 = scmp.ne.s32.totalorder %s142, %s143
      %p154 = scmp.eq.s32.totalorder %s24, 0
      %p155 = por %p153, %p154
      %p156 = scmp.ne.s32.totalorder %s142, %s143
      %p157 = scmp.eq.s32.totalorder %s25, 1
      %p158 = por %p156, %p157
      %p160 = scmp.ne.s32.totalorder %s143, %s159
      %p161 = scmp.eq.s32.totalorder %s25, 0
      %p162 = por %p160, %p161
      %p163 = scmp.le.s32.totalorder 1, %s19
      %p164 = scmp.lt.s32.totalorder %s19, 3
      %p165 = pnand %p163, %p164
      %p166 = pneg %p165
      // Predicated region
      $region9: #{classifier_forward.1} parent=5 // pred_check
        _
      $region10: #{classifier_forward.1} parent=5 // pred_check_branch
        %168 = sbr.rel (%p165) target = $region12
      $region11: #{classifier_forward.1} parent=5 // pred_region
        %s169 = ssub.s32 %s19, 1
        // Predicated region
        $region13: #{classifier_forward.1} parent=11 // pred_check
          %p170 = pneg %p66
        $region14: #{classifier_forward.1} parent=11 // pred_check_branch
          %172 = sbr.rel (%p170) target = $region16
        $region15: #{classifier_forward.1} parent=11 // pred_region
          %174 = vsyncadd [#allocation6], 0
          %s175 = sshll.u32 %s1, 4
          %s176 = int_to_ptr.hbm [resolvable:$true] %s175
          %s177 = sshll.u32 [#allocation5], 4
          %s178 = int_to_ptr.vmem [resolvable:$true] %s177
          %183 = dma.hbm_to_vmem [thread:$0]  %s176, 1024, %s178, [#allocation6], 64, 64, 4
        $region16: #{classifier_forward.1} parent=11 // pred_fallthru
          _
        // Predicated region
        $region17: #{classifier_forward.1} parent=11 // pred_check
          %p184 = pneg %p87
        $region18: #{classifier_forward.1} parent=11 // pred_check_branch
          %186 = sbr.rel (%p184) target = $region20
        $region19: #{classifier_forward.1} parent=11 // pred_region
          %188 = vsyncadd [#allocation6], 0
          %s189 = sshll.u32 %s2, 4
          %s190 = int_to_ptr.hbm [resolvable:$true] %s189
          %s191 = sshll.u32 [#allocation7], 4
          %s192 = int_to_ptr.vmem [resolvable:$true] %s191
          %197 = dma.hbm_to_vmem [thread:$0]  %s190, 1024, %s192, [#allocation6], 64, 64, 4
        $region20: #{classifier_forward.1} parent=11 // pred_fallthru
          _
        // Predicated region
        $region21: #{classifier_forward.1} parent=11 // pred_check
          %p198 = pneg %p108
        $region22: #{classifier_forward.1} parent=11 // pred_check_branch
          %200 = sbr.rel (%p198) target = $region24
        $region23: #{classifier_forward.1} parent=11 // pred_region
          %202 = vsyncadd [#allocation9], 0
          %s203 = sshll.u32 %s3, 4
          %s204 = int_to_ptr.hbm [resolvable:$true] %s203
          %s205 = sshll.u32 [#allocation8], 4
          %s206 = int_to_ptr.vmem [resolvable:$true] %s205
          %211 = dma.hbm_to_vmem [thread:$0]  %s204, 1024, %s206, [#allocation9], 64, 64, 4
        $region24: #{classifier_forward.1} parent=11 // pred_fallthru
          _
        // Predicated region
        $region25: #{classifier_forward.1} parent=11 // pred_check
          %p212 = pneg %p129
        $region26: #{classifier_forward.1} parent=11 // pred_check_branch
          %214 = sbr.rel (%p212) target = $region28
        $region27: #{classifier_forward.1} parent=11 // pred_region
          %216 = vsyncadd [#allocation9], 0
          %s217 = sshll.u32 %s4, 4
          %s218 = int_to_ptr.hbm [resolvable:$true] %s217
          %s219 = sshll.u32 [#allocation10], 4
          %s220 = int_to_ptr.vmem [resolvable:$true] %s219
          %225 = dma.hbm_to_vmem [thread:$0]  %s218, 1024, %s220, [#allocation9], 64, 64, 4
        $region28: #{classifier_forward.1} parent=11 // pred_fallthru
          _
      $region12: #{classifier_forward.1} parent=5 // pred_fallthru
        _
      %p226 = scmp.lt.s32.totalorder %s19, 2
      // Predicated region
      $region29: #{classifier_forward.1} parent=5 // pred_check
        %p227 = pneg %p226
      $region30: #{classifier_forward.1} parent=5 // pred_check_branch
        %229 = sbr.rel (%p227) target = $region32
      $region31: #{classifier_forward.1} parent=5 // pred_region
        // Predicated region
        $region33: #{classifier_forward.1} parent=31 // pred_check
          %p230 = pneg %p39
        $region34: #{classifier_forward.1} parent=31 // pred_check_branch
          %232 = sbr.rel (%p230) target = $region36
        $region35: #{classifier_forward.1} parent=31 // pred_region
          %s233 = sand.u32 %s29, 1
          %s234 = scalar_lea.sflag [#allocation3], %s233
          %s235 = sand.u32 %s29, 1
          %s236 = smul.addr %s235, 8
          %s237 = scalar_lea.vmem [#allocation2], %s236
          %239 = vsyncadd %s234, 0
          %s240 = smul.addr %s19, 8
          %s241 = scalar_lea.hbm %s0, %s240
          %s243 = sshll.u32 %s241, 4
          %s244 = int_to_ptr.hbm [resolvable:$true] %s243
          %s245 = sshll.u32 %s237, 4
          %s246 = int_to_ptr.vmem [resolvable:$true] %s245
          %248 = dma.hbm_to_vmem [thread:$0]  %s244, 128, %s246, %s234
        $region36: #{classifier_forward.1} parent=31 // pred_fallthru
          _
      $region32: #{classifier_forward.1} parent=5 // pred_fallthru
        _
      %p249 = scmp.le.s32.totalorder 1, %s19
      %p250 = scmp.lt.s32.totalorder %s19, 3
      %p251 = pnand %p249, %p250
      %p252 = pneg %p251
      // Predicated region
      $region37: #{classifier_forward.1} parent=5 // pred_check
        _
      $region38: #{classifier_forward.1} parent=5 // pred_check_branch
        %254 = sbr.rel (%p251) target = $region40
      $region39: #{classifier_forward.1} parent=5 // pred_region
        %s255 = ssub.s32 %s19, 1
        %s256 = sand.u32 %s32, 1
        %s257 = scalar_lea.sflag [#allocation3], %s256
        %s258 = sand.u32 %s32, 1
        %s259 = smul.addr %s258, 8
        %s260 = scalar_lea.vmem [#allocation2], %s259
        // Predicated region
        $region41: #{classifier_forward.1} parent=39 // pred_check
          %p261 = pneg %p45
        $region42: #{classifier_forward.1} parent=39 // pred_check_branch
          %263 = sbr.rel (%p261) target = $region44
        $region43: #{classifier_forward.1} parent=39 // pred_region
          %265 = dma.done %s257, 128
        $region44: #{classifier_forward.1} parent=39 // pred_fallthru
          _
        // Predicated region
        $region45: #{classifier_forward.1} parent=39 // pred_check
          %p266 = pneg %p66
        $region46: #{classifier_forward.1} parent=39 // pred_check_branch
          %268 = sbr.rel (%p266) target = $region48
        $region47: #{classifier_forward.1} parent=39 // pred_region
          %270 = dma.done [#allocation6], 1024
        $region48: #{classifier_forward.1} parent=39 // pred_fallthru
          _
        // Predicated region
        $region49: #{classifier_forward.1} parent=39 // pred_check
          %p271 = pneg %p87
        $region50: #{classifier_forward.1} parent=39 // pred_check_branch
          %273 = sbr.rel (%p271) target = $region52
        $region51: #{classifier_forward.1} parent=39 // pred_region
          %275 = dma.done [#allocation6], 1024
        $region52: #{classifier_forward.1} parent=39 // pred_fallthru
          _
        // Predicated region
        $region53: #{classifier_forward.1} parent=39 // pred_check
          %p276 = pneg %p108
        $region54: #{classifier_forward.1} parent=39 // pred_check_branch
          %278 = sbr.rel (%p276) target = $region56
        $region55: #{classifier_forward.1} parent=39 // pred_region
          %280 = dma.done [#allocation9], 1024
        $region56: #{classifier_forward.1} parent=39 // pred_fallthru
          _
        // Predicated region
        $region57: #{classifier_forward.1} parent=39 // pred_check
          %p281 = pneg %p129
        $region58: #{classifier_forward.1} parent=39 // pred_check_branch
          %283 = sbr.rel (%p281) target = $region60
        $region59: #{classifier_forward.1} parent=39 // pred_region
          %285 = dma.done [#allocation9], 1024
        $region60: #{classifier_forward.1} parent=39 // pred_fallthru
          _
        %s286 = sand.u32 %s32, 1
        %s287 = scalar_lea.sflag [#allocation3], %s286
        %s288 = sand.u32 %s32, 1
        %s289 = smul.addr %s288, 8
        %s290 = scalar_lea.vmem [#allocation2], %s289
        %p291 = pneg %p45
        %p292 = pneg %p42
        %p293 = pneg %p66
        %p294 = pneg %p63
        %p295 = pneg %p87
        %p296 = pneg %p84
        %p297 = pneg %p108
        %p298 = pneg %p105
        %p299 = pneg %p129
        %p300 = pneg %p126
        %p301 = pneg %p155
        %p302 = pneg %p152
        %s303 = sand.u32 %s142, 1
        %s304 = scalar_lea.sflag [#allocation4], %s303
        %s305 = sand.u32 %s142, 1
        %s306 = smul.addr %s305, 8
        %s307 = scalar_lea.vmem [#allocation11], %s306
        %v308 = vld [vmem:[%s260] sm:$0xff]
        %v309 = vpack.c.bf16 %v308, %v308
        %v310 = vld [vmem:[#allocation5] sm:$0xf]
        %v311 = vld [vmem:[#allocation5 + $0x4] sm:$0xf]
        %v312 = vld [vmem:[#allocation5 + $0x8] sm:$0xf]
        %v313 = vld [vmem:[#allocation5 + $0xc] sm:$0xf]
        %v314 = vld [vmem:[#allocation5 + $0x10] sm:$0xf]
        %v315 = vld [vmem:[#allocation5 + $0x14] sm:$0xf]
        %v316 = vld [vmem:[#allocation5 + $0x18] sm:$0xf]
        %v317 = vld [vmem:[#allocation5 + $0x1c] sm:$0xf]
        %v318 = vld [vmem:[#allocation5 + $0x20] sm:$0xf]
        %v319 = vld [vmem:[#allocation5 + $0x24] sm:$0xf]
        %v320 = vld [vmem:[#allocation5 + $0x28] sm:$0xf]
        %v321 = vld [vmem:[#allocation5 + $0x2c] sm:$0xf]
        %v322 = vld [vmem:[#allocation5 + $0x30] sm:$0xf]
        %v323 = vld [vmem:[#allocation5 + $0x34] sm:$0xf]
        %v324 = vld [vmem:[#allocation5 + $0x38] sm:$0xf]
        %v325 = vld [vmem:[#allocation5 + $0x3c] sm:$0xf]
        %v342 = vunpack.c.l.b16 %v310
        %v343 = vunpack.c.l.b16 %v311
        %v344 = vunpack.c.l.b16 %v312
        %v345 = vunpack.c.l.b16 %v313
        %v346 = vunpack.c.l.b16 %v314
        %v347 = vunpack.c.l.b16 %v315
        %v348 = vunpack.c.l.b16 %v316
        %v349 = vunpack.c.l.b16 %v317
        %v350 = vunpack.c.l.b16 %v318
        %v351 = vunpack.c.l.b16 %v319
        %v352 = vunpack.c.l.b16 %v320
        %v353 = vunpack.c.l.b16 %v321
        %v354 = vunpack.c.l.b16 %v322
        %v355 = vunpack.c.l.b16 %v323
        %v356 = vunpack.c.l.b16 %v324
        %v357 = vunpack.c.l.b16 %v325
        %v358 = vpack.c.b16 %v343, %v342
        %v359 = vpack.c.b16 %v345, %v344
        %v360 = vpack.c.b16 %v347, %v346
        %v361 = vpack.c.b16 %v349, %v348
        %v362 = vpack.c.b16 %v351, %v350
        %v363 = vpack.c.b16 %v353, %v352
        %v364 = vpack.c.b16 %v355, %v354
        %v365 = vpack.c.b16 %v357, %v356
        %374 = vmatpush.bf16.msra.mxu0 %v365
        %375 = vmatpush.bf16.msra.mxu0 %v364
        %376 = vmatpush.bf16.msra.mxu0 %v363
        %377 = vmatpush.bf16.msra.mxu0 %v362
        %378 = vmatpush.bf16.msra.mxu0 %v361
        %379 = vmatpush.bf16.msra.mxu0 %v360
        %380 = vmatpush.bf16.msra.mxu0 %v359
        %381 = vmatpush.bf16.msra.mxu0 %v358
        %382 = vmatmul.bf16.gmra.mxu0 %v309
        %v383 = vpop.f32.mrf.mxu0
        %v384 = vadd.f32 0.0, %v383
        %v385 = vpop.f32.mrf.mxu0
        %386 = vdwg.mxu0
        %v387 = vpack.c.bf16 %v384, %v384
        %v388 = vld [vmem:[#allocation7] sm:$0xf]
        %v389 = vld [vmem:[#allocation7 + $0x4] sm:$0xf]
        %v390 = vld [vmem:[#allocation7 + $0x8] sm:$0xf]
        %v391 = vld [vmem:[#allocation7 + $0xc] sm:$0xf]
        %v392 = vld [vmem:[#allocation7 + $0x10] sm:$0xf]
        %v393 = vld [vmem:[#allocation7 + $0x14] sm:$0xf]
        %v394 = vld [vmem:[#allocation7 + $0x18] sm:$0xf]
        %v395 = vld [vmem:[#allocation7 + $0x1c] sm:$0xf]
        %v396 = vld [vmem:[#allocation7 + $0x20] sm:$0xf]
        %v397 = vld [vmem:[#allocation7 + $0x24] sm:$0xf]
        %v398 = vld [vmem:[#allocation7 + $0x28] sm:$0xf]
        %v399 = vld [vmem:[#allocation7 + $0x2c] sm:$0xf]
        %v400 = vld [vmem:[#allocation7 + $0x30] sm:$0xf]
        %v401 = vld [vmem:[#allocation7 + $0x34] sm:$0xf]
        %v402 = vld [vmem:[#allocation7 + $0x38] sm:$0xf]
        %v403 = vld [vmem:[#allocation7 + $0x3c] sm:$0xf]
        %v420 = vunpack.c.l.b16 %v388
        %v421 = vunpack.c.l.b16 %v389
        %v422 = vunpack.c.l.b16 %v390
        %v423 = vunpack.c.l.b16 %v391
        %v424 = vunpack.c.l.b16 %v392
        %v425 = vunpack.c.l.b16 %v393
        %v426 = vunpack.c.l.b16 %v394
        %v427 = vunpack.c.l.b16 %v395
        %v428 = vunpack.c.l.b16 %v396
        %v429 = vunpack.c.l.b16 %v397
        %v430 = vunpack.c.l.b16 %v398
        %v431 = vunpack.c.l.b16 %v399
        %v432 = vunpack.c.l.b16 %v400
        %v433 = vunpack.c.l.b16 %v401
        %v434 = vunpack.c.l.b16 %v402
        %v435 = vunpack.c.l.b16 %v403
        %v436 = vpack.c.b16 %v421, %v420
        %v437 = vpack.c.b16 %v423, %v422
        %v438 = vpack.c.b16 %v425, %v424
        %v439 = vpack.c.b16 %v427, %v426
        %v440 = vpack.c.b16 %v429, %v428
        %v441 = vpack.c.b16 %v431, %v430
        %v442 = vpack.c.b16 %v433, %v432
        %v443 = vpack.c.b16 %v435, %v434
        %452 = vmatpush.bf16.msra.mxu0 %v443
        %453 = vmatpush.bf16.msra.mxu0 %v442
        %454 = vmatpush.bf16.msra.mxu0 %v441
        %455 = vmatpush.bf16.msra.mxu0 %v440
        %456 = vmatpush.bf16.msra.mxu0 %v439
        %457 = vmatpush.bf16.msra.mxu0 %v438
        %458 = vmatpush.bf16.msra.mxu0 %v437
        %459 = vmatpush.bf16.msra.mxu0 %v436
        %460 = vmatmul.bf16.gmra.mxu0 %v387
        %v461 = vpop.f32.mrf.mxu0
        %v462 = vadd.f32 0.0, %v461
        %v463 = vpop.f32.mrf.mxu0
        %464 = vdwg.mxu0
        %v465 = vld [vmem:[#allocation8] sm:$0xf]
        %v466 = vld [vmem:[#allocation8 + $0x4] sm:$0xf]
        %v467 = vld [vmem:[#allocation8 + $0x8] sm:$0xf]
        %v468 = vld [vmem:[#allocation8 + $0xc] sm:$0xf]
        %v469 = vld [vmem:[#allocation8 + $0x10] sm:$0xf]
        %v470 = vld [vmem:[#allocation8 + $0x14] sm:$0xf]
        %v471 = vld [vmem:[#allocation8 + $0x18] sm:$0xf]
        %v472 = vld [vmem:[#allocation8 + $0x1c] sm:$0xf]
        %v473 = vld [vmem:[#allocation8 + $0x20] sm:$0xf]
        %v474 = vld [vmem:[#allocation8 + $0x24] sm:$0xf]
        %v475 = vld [vmem:[#allocation8 + $0x28] sm:$0xf]
        %v476 = vld [vmem:[#allocation8 + $0x2c] sm:$0xf]
        %v477 = vld [vmem:[#allocation8 + $0x30] sm:$0xf]
        %v478 = vld [vmem:[#allocation8 + $0x34] sm:$0xf]
        %v479 = vld [vmem:[#allocation8 + $0x38] sm:$0xf]
        %v480 = vld [vmem:[#allocation8 + $0x3c] sm:$0xf]
        %v497 = vunpack.c.l.b16 %v465
        %v498 = vunpack.c.l.b16 %v466
        %v499 = vunpack.c.l.b16 %v467
        %v500 = vunpack.c.l.b16 %v468
        %v501 = vunpack.c.l.b16 %v469
        %v502 = vunpack.c.l.b16 %v470
        %v503 = vunpack.c.l.b16 %v471
        %v504 = vunpack.c.l.b16 %v472
        %v505 = vunpack.c.l.b16 %v473
        %v506 = vunpack.c.l.b16 %v474
        %v507 = vunpack.c.l.b16 %v475
        %v508 = vunpack.c.l.b16 %v476
        %v509 = vunpack.c.l.b16 %v477
        %v510 = vunpack.c.l.b16 %v478
        %v511 = vunpack.c.l.b16 %v479
        %v512 = vunpack.c.l.b16 %v480
        %v513 = vpack.c.b16 %v498, %v497
        %v514 = vpack.c.b16 %v500, %v499
        %v515 = vpack.c.b16 %v502, %v501
        %v516 = vpack.c.b16 %v504, %v503
        %v517 = vpack.c.b16 %v506, %v505
        %v518 = vpack.c.b16 %v508, %v507
        %v519 = vpack.c.b16 %v510, %v509
        %v520 = vpack.c.b16 %v512, %v511
        %529 = vmatpush.bf16.msra.mxu0 %v520
        %530 = vmatpush.bf16.msra.mxu0 %v519
        %531 = vmatpush.bf16.msra.mxu0 %v518
        %532 = vmatpush.bf16.msra.mxu0 %v517
        %533 = vmatpush.bf16.msra.mxu0 %v516
        %534 = vmatpush.bf16.msra.mxu0 %v515
        %535 = vmatpush.bf16.msra.mxu0 %v514
        %536 = vmatpush.bf16.msra.mxu0 %v513
        %537 = vmatmul.bf16.gmra.mxu0 %v387
        %v538 = vpop.f32.mrf.mxu0
        %v539 = vadd.f32 0.0, %v538
        %v540 = vpop.f32.mrf.mxu0
        %541 = vdwg.mxu0
        %v542 = vmul.f32 %v462, %v539
        %v543 = vpack.c.bf16 %v542, %v542
        %v544 = vld [vmem:[#allocation10] sm:$0xf]
        %v545 = vld [vmem:[#allocation10 + $0x4] sm:$0xf]
        %v546 = vld [vmem:[#allocation10 + $0x8] sm:$0xf]
        %v547 = vld [vmem:[#allocation10 + $0xc] sm:$0xf]
        %v548 = vld [vmem:[#allocation10 + $0x10] sm:$0xf]
        %v549 = vld [vmem:[#allocation10 + $0x14] sm:$0xf]
        %v550 = vld [vmem:[#allocation10 + $0x18] sm:$0xf]
        %v551 = vld [vmem:[#allocation10 + $0x1c] sm:$0xf]
        %v552 = vld [vmem:[#allocation10 + $0x20] sm:$0xf]
        %v553 = vld [vmem:[#allocation10 + $0x24] sm:$0xf]
        %v554 = vld [vmem:[#allocation10 + $0x28] sm:$0xf]
        %v555 = vld [vmem:[#allocation10 + $0x2c] sm:$0xf]
        %v556 = vld [vmem:[#allocation10 + $0x30] sm:$0xf]
        %v557 = vld [vmem:[#allocation10 + $0x34] sm:$0xf]
        %v558 = vld [vmem:[#allocation10 + $0x38] sm:$0xf]
        %v559 = vld [vmem:[#allocation10 + $0x3c] sm:$0xf]
        %v576 = vunpack.c.l.b16 %v544
        %v577 = vunpack.c.l.b16 %v545
        %v578 = vunpack.c.l.b16 %v546
        %v579 = vunpack.c.l.b16 %v547
        %v580 = vunpack.c.l.b16 %v548
        %v581 = vunpack.c.l.b16 %v549
        %v582 = vunpack.c.l.b16 %v550
        %v583 = vunpack.c.l.b16 %v551
        %v584 = vunpack.c.l.b16 %v552
        %v585 = vunpack.c.l.b16 %v553
        %v586 = vunpack.c.l.b16 %v554
        %v587 = vunpack.c.l.b16 %v555
        %v588 = vunpack.c.l.b16 %v556
        %v589 = vunpack.c.l.b16 %v557
        %v590 = vunpack.c.l.b16 %v558
        %v591 = vunpack.c.l.b16 %v559
        %v592 = vpack.c.b16 %v577, %v576
        %v593 = vpack.c.b16 %v579, %v578
        %v594 = vpack.c.b16 %v581, %v580
        %v595 = vpack.c.b16 %v583, %v582
        %v596 = vpack.c.b16 %v585, %v584
        %v597 = vpack.c.b16 %v587, %v586
        %v598 = vpack.c.b16 %v589, %v588
        %v599 = vpack.c.b16 %v591, %v590
        %608 = vmatpush.bf16.msra.mxu0 %v599
        %609 = vmatpush.bf16.msra.mxu0 %v598
        %610 = vmatpush.bf16.msra.mxu0 %v597
        %611 = vmatpush.bf16.msra.mxu0 %v596
        %612 = vmatpush.bf16.msra.mxu0 %v595
        %613 = vmatpush.bf16.msra.mxu0 %v594
        %614 = vmatpush.bf16.msra.mxu0 %v593
        %615 = vmatpush.bf16.msra.mxu0 %v592
        %616 = vmatmul.bf16.gmra.mxu0 %v543
        %v617 = vpop.f32.mrf.mxu0
        %v618 = vadd.f32 0.0, %v617
        %v619 = vpop.f32.mrf.mxu0
        %620 = vdwg.mxu0
        %vm621 = vcmask 80896
        %622 = vst.msk [vmem:[%s307] sm:$0xff] %vm621, %v618
        %s623 = sand.u32 %s142, 1
        %s624 = scalar_lea.sflag [#allocation4], %s623
        %s625 = sand.u32 %s142, 1
        %s626 = smul.addr %s625, 8
        %s627 = scalar_lea.vmem [#allocation11], %s626
        // Predicated region
        $region61: #{classifier_forward.1} parent=39 // pred_check
          %p628 = pneg %p152
        $region62: #{classifier_forward.1} parent=39 // pred_check_branch
          %630 = sbr.rel (%p628) target = $region64
        $region63: #{classifier_forward.1} parent=39 // pred_region
          %632 = vsyncadd %s624, 0
          %s633 = smul.addr %s24, 8
          %s634 = scalar_lea.hbm %s5, %s633
          %s636 = sshll.u32 %s627, 4
          %s637 = int_to_ptr.vmem [resolvable:$true] %s636
          %s638 = sshll.u32 %s634, 4
          %s639 = int_to_ptr.hbm [resolvable:$true] %s638
          %641 = dma.vmem_to_hbm [thread:$0]  %s637, 128, %s639, %s624
        $region64: #{classifier_forward.1} parent=39 // pred_fallthru
          _
      $region40: #{classifier_forward.1} parent=5 // pred_fallthru
        _
      %p642 = scmp.le.s32.totalorder 2, %s19
      // Predicated region
      $region65: #{classifier_forward.1} parent=5 // pred_check
        %p643 = pneg %p642
      $region66: #{classifier_forward.1} parent=5 // pred_check_branch
        %645 = sbr.rel (%p643) target = $region68
      $region67: #{classifier_forward.1} parent=5 // pred_region
        %s646 = ssub.s32 %s19, 2
        // Predicated region
        $region69: #{classifier_forward.1} parent=67 // pred_check
          %p647 = pneg %p158
        $region70: #{classifier_forward.1} parent=67 // pred_check_branch
          %649 = sbr.rel (%p647) target = $region72
        $region71: #{classifier_forward.1} parent=67 // pred_region
          %s650 = sand.u32 %s143, 1
          %s651 = scalar_lea.sflag [#allocation4], %s650
          %s652 = sand.u32 %s143, 1
          %s653 = smul.addr %s652, 8
          %s654 = scalar_lea.vmem [#allocation11], %s653
          %656 = dma.done %s651, 128
        $region72: #{classifier_forward.1} parent=67 // pred_fallthru
          _
      $region68: #{classifier_forward.1} parent=5 // pred_fallthru
        _
    $region6: #{classifier_forward.1} parent=1 // loop_footer
      %s23 = sadd.s32 1, %s19
    $region7: #{classifier_forward.1} parent=1 // loop_footer_branch
      %18 = sbr.rel target = $region3
    $region8: #{classifier_forward.1} parent=1 // loop_exit
      _
    %657 = vsyncpa [#allocation3], 1
    %s658 = scalar_lea.sflag [#allocation3], 1
    %659 = vsyncpa %s658, 1
    %660 = vsyncpa [#allocation6], 1
    %661 = vsyncpa [#allocation9], 1
    %662 = vsyncpa [#allocation4], 1
    %s663 = scalar_lea.sflag [#allocation4], 1
    %664 = vsyncpa %s663, 1

</llo_original>
